<compile_context>
chip_gen: v6e
topology: v6e:2x2x1
jax: 0.10.0
libtpu: 0.0.40
codegen_flags: <defaults>
</compile_context>

<pallas_src>
import functools

import jax
import jax.numpy as jnp
from jax import lax
from jax.experimental import pallas as pl
from jax.experimental.pallas import tpu as pltpu


# ---------------------------------------------------------------------------
# Small integer helpers (power-of-two fast paths for the hoisted masks)
# ---------------------------------------------------------------------------

def _mod(a, d):
    if d & (d - 1) == 0:
        return a & (d - 1)
    return a % d


def _floor_div(a, d):
    if d & (d - 1) == 0:
        return a >> (d.bit_length() - 1)
    return a // d


# ---------------------------------------------------------------------------
# Fused Pallas kernel (one packed slab of images per grid step)
# ---------------------------------------------------------------------------

def _bottleneck_kernel(x_ref, w1t_ref, b1_ref, w2f_ref, b2_ref, w3t_ref, b3_ref,
                       o_ref, *, height, width, images, k):
    # Shapes (channel-major, lane-dense, L = images * height * width):
    #   x:   (Cin, L)  f32          w1t: (Cmid, Cin)         bf16   b1: (Cmid, 1) f32
    #   w2f: (Cmid, k*k*Cmid) bf16  (im2col-flattened)              b2: (Cmid, 1) f32
    #   w3t: (Cout, Cmid)     bf16  (p folded in)                   b3: (Cout, 1) f32
    #   o:   (Cout, L) f32
    hw = height * width
    L = images * hw
    pad = k // 2

    x = x_ref[...]                                              # (Cin, L) f32

    # ---- conv1 (1x1) + folded-BN bias + ReLU ------------------------------
    y1 = jnp.dot(w1t_ref[...], x.astype(jnp.bfloat16),
                 preferred_element_type=jnp.float32) + b1_ref[...]
    y1 = jnp.maximum(y1, 0.0)                                   # (Cmid, L) f32

    # ---- conv2 (kxk, 'same', stride=1) + folded-BN bias + ReLU ------------
    # Hoisted boundary masks (computed once per grid step, reused per tap).
    lane = lax.broadcasted_iota(jnp.int32, (1, L), 1)
    col = _mod(lane, width)                                     # column within a row
    row = _mod(_floor_div(lane, width), height)                 # row within ONE image
    col_ok = {dw: (col + dw >= 0) & (col + dw < width)
              for dw in range(-pad, pad + 1) if dw != 0}
    row_ok = {dh: (row + dh >= 0) & (row + dh < height)
              for dh in range(-pad, pad + 1) if dh != 0}

    # im2col stack: each tap shifts y1 by its flat offset via pltpu.roll (XLU)
    # and zeroes the invalid border / cross-image lanes; a single MXU matmul
    # then contracts all k*k*Cmid inputs at once.
    taps = []
    for ki in range(k):
        for kj in range(k):
            dh, dw = ki - pad, kj - pad
            s = dh * width + dw                                 # flat lane shift
            yt = y1 if s == 0 else pltpu.roll(y1, shift=(-s) % L, axis=1)
            if dh != 0 and dw != 0:
                yt = jnp.where(row_ok[dh] & col_ok[dw], yt, 0.0)
            elif dh != 0:
                yt = jnp.where(row_ok[dh], yt, 0.0)
            elif dw != 0:
                yt = jnp.where(col_ok[dw], yt, 0.0)
            taps.append(yt)
    y_stack = jnp.concatenate(taps, axis=0).astype(jnp.bfloat16)  # (k*k*Cmid, L)
    y2 = jnp.dot(w2f_ref[...], y_stack,
                 preferred_element_type=jnp.float32) + b2_ref[...]
    y2 = jnp.maximum(y2, 0.0)                                   # (Cmid, L) f32

    # ---- conv3 (1x1, p already folded into weights) + residual + ReLU -----
    z3 = jnp.dot(w3t_ref[...], y2.astype(jnp.bfloat16),
                 preferred_element_type=jnp.float32) + b3_ref[...]
    o_ref[...] = jnp.maximum(z3 + x, 0.0).astype(o_ref.dtype)


# ---------------------------------------------------------------------------
# Wrapper
# ---------------------------------------------------------------------------

def bottleneck_forward(x_nchw, params, *, kernel_size, stride, p, flagmul):
    """Eval-mode Bottleneck forward.  downsample=None, stride must be 1."""
    # TODO(synk): training-branch stochastic-depth (Bernoulli gate) and the
    # external `downsample` module (stride>1 path) are not implemented; the
    # eval path with downsample=None / stride=1 is reproduced exactly.
    assert stride == 1, "stride>1 requires an external downsample module"
    n, c_in, h, w = x_nchw.shape
    hw = h * w
    assert hw % 128 == 0, "flattened H*W must be lane-dense (multiple of 128)"

    # ---- batch packing: min(N, 2) parallel grid steps (one per v7x TC), with
    # ceil(N/steps) images packed along the lane axis per step.  The reshapes/
    # transposes here are cheap layout plumbing (nb=1 makes them no-ops).
    num_steps = min(n, 2)
    nb = -(-n // num_steps)
    n_pad = num_steps * nb
    if n_pad != n:
        x_nchw = jnp.concatenate(
            [x_nchw, jnp.zeros((n_pad - n, c_in, h, w), x_nchw.dtype)], axis=0)
    lanes = nb * hw
    x_packed = (x_nchw.reshape(num_steps, nb, c_in, hw)
                .transpose(0, 2, 1, 3)
                .reshape(num_steps, c_in, lanes))

    # ---- weight prep: channel-major orientation, fold p into conv3, bf16 MXU
    # operands (biases stay f32; all folds are constant under jit).
    k = kernel_size
    c_mid = params["w1"].shape[1]
    c_out = params["w3"].shape[1]
    assert c_out == c_in, "residual add requires infilter == midfilter*expansion"
    scale = float(p) if flagmul else 1.0

    w1t = params["w1"].T.astype(jnp.bfloat16)                       # (Cmid, Cin)
    b1 = params["b1"].reshape(c_mid, 1).astype(jnp.float32)
    w2f = params["w2"].reshape(k * k * c_mid, c_mid).T.astype(jnp.bfloat16)
    b2 = params["b2"].reshape(c_mid, 1).astype(jnp.float32)
    w3t = (params["w3"] * scale).T.astype(jnp.bfloat16)             # (Cout, Cmid)
    b3 = (params["b3"] * scale).reshape(c_out, 1).astype(jnp.float32)

    out_packed = pl.pallas_call(
        functools.partial(_bottleneck_kernel, height=h, width=w, images=nb, k=k),
        out_shape=jax.ShapeDtypeStruct((num_steps, c_out, lanes), jnp.float32),
        grid=(num_steps,),
        in_specs=[
            pl.BlockSpec((None, c_in, lanes), lambda i: (i, 0, 0)),
            pl.BlockSpec((c_mid, c_in), lambda i: (0, 0)),
            pl.BlockSpec((c_mid, 1), lambda i: (0, 0)),
            pl.BlockSpec((c_mid, k * k * c_mid), lambda i: (0, 0)),
            pl.BlockSpec((c_mid, 1), lambda i: (0, 0)),
            pl.BlockSpec((c_out, c_mid), lambda i: (0, 0)),
            pl.BlockSpec((c_out, 1), lambda i: (0, 0)),
        ],
        out_specs=pl.BlockSpec((None, c_out, lanes), lambda i: (i, 0, 0)),
        compiler_params=pltpu.CompilerParams(
            dimension_semantics=("parallel",)),
    )(x_packed, w1t, b1, w2f, b2, w3t, b3)

    out = (out_packed.reshape(num_steps, c_out, nb, hw)
           .transpose(0, 2, 1, 3)
           .reshape(n_pad, c_out, h, w))
    return out[:n]                                                  # stays NCHW


# ---------------------------------------------------------------------------
# Parameter setup (glue): deterministic init + eval-mode BatchNorm folding
# ---------------------------------------------------------------------------

def fold_bn(w, b, gamma, beta, mean, var, eps=1e-5):
    """Fold eval-mode BN into conv weight (..., Cout) and bias (Cout,)."""
    s = gamma / jnp.sqrt(var + eps)
    return w * s, (b - mean) * s + beta


def make_bottleneck_params(key, infilter, midfilter, kernel_size, expansion=4):
    ks = jax.random.split(key, 12)
    outfilter = midfilter * expansion

    def conv_init(k, shape):
        return 0.1 * jax.random.normal(k, shape, jnp.float32)

    def bn_init(kg, kb, km, kv, c):
        gamma = 1.0 + 0.1 * jax.random.normal(kg, (c,), jnp.float32)
        beta = 0.1 * jax.random.normal(kb, (c,), jnp.float32)
        mean = 0.1 * jax.random.normal(km, (c,), jnp.float32)
        var = 0.5 + jax.nn.softplus(jax.random.normal(kv, (c,), jnp.float32))
        return gamma, beta, mean, var

    # conv1: 1x1, infilter -> midfilter   (stored as (Cin, Cout))
    w1 = conv_init(ks[0], (infilter, midfilter))
    b1 = conv_init(ks[1], (midfilter,))
    w1, b1 = fold_bn(w1, b1, *bn_init(ks[2], ks[3], ks[4], ks[5], midfilter))

    # conv2: kxk, midfilter -> midfilter  (stored HWIO: (k, k, Cin, Cout))
    w2 = conv_init(ks[6], (kernel_size, kernel_size, midfilter, midfilter))
    b2 = conv_init(ks[7], (midfilter,))
    w2, b2 = fold_bn(w2, b2, *bn_init(ks[8], ks[9], ks[10], ks[11], midfilter))

    # conv3: 1x1, midfilter -> outfilter
    ks2 = jax.random.split(ks[11], 8)
    w3 = conv_init(ks2[0], (midfilter, outfilter))
    b3 = conv_init(ks2[1], (outfilter,))
    w3, b3 = fold_bn(w3, b3, *bn_init(ks2[2], ks2[3], ks2[4], ks2[5], outfilter))

    return dict(w1=w1, b1=b1, w2=w2, b2=b2, w3=w3, b3=b3)


# ---------------------------------------------------------------------------
# Pure-JAX reference (f32) for verification of the Pallas kernel
# ---------------------------------------------------------------------------

def bottleneck_reference(x_nchw, params, *, kernel_size, stride, p, flagmul):
    x = jnp.transpose(x_nchw, (0, 2, 3, 1))
    shortcut = x
    dn = ("NHWC", "HWIO", "NHWC")
    pad = kernel_size // 2
    y = jnp.maximum(jnp.einsum("nhwc,cd->nhwd", x, params["w1"]) + params["b1"], 0.0)
    y = lax.conv_general_dilated(y, params["w2"], (stride, stride),
                                 [(pad, pad), (pad, pad)], dimension_numbers=dn)
    y = jnp.maximum(y + params["b2"], 0.0)
    z = jnp.einsum("nhwc,cd->nhwd", y, params["w3"]) + params["b3"]
    scale = p if flagmul else 1.0
    out = jnp.maximum(z * scale + shortcut, 0.0)
    return jnp.transpose(out, (0, 3, 1, 2))


# ---------------------------------------------------------------------------
# Main
# ---------------------------------------------------------------------------

if __name__ == "__main__":
    # Module config (stride=1, downsample=None so the residual add type-checks)
    INFILTER, MIDFILTER, KSIZE, STRIDE = 16, 4, 3, 1
    P, FLAGMUL = 0.5, True
    N, H, W = 4, 16, 16            # N=4 -> 2 parallel grid steps x 2 packed images

    key = jax.random.PRNGKey(0)
    kx, kp = jax.random.split(key)
    x = jax.random.normal(kx, (N, INFILTER, H, W), jnp.float32)   # NCHW like PyTorch
    params = make_bottleneck_params(kp, INFILTER, MIDFILTER, KSIZE)

    fwd = jax.jit(functools.partial(bottleneck_forward, kernel_size=KSIZE,
                                    stride=STRIDE, p=P, flagmul=FLAGMUL))
    out = jax.block_until_ready(fwd(x, params))

    ref = bottleneck_reference(x, params, kernel_size=KSIZE, stride=STRIDE,
                               p=P, flagmul=FLAGMUL)
    assert out.shape == (N, MIDFILTER * 4, H, W), out.shape
    # bf16 MXU operands (per perf review) -> tolerance relaxed vs the f32 reference.
    err = float(jnp.abs(out - ref).max())
    assert jnp.allclose(out, ref, atol=2e-2, rtol=2e-2), err

    print("KERNEL_OK")
</pallas_src>

<mosaic_0001>
module attributes {stable_mosaic.version = 11 : i64} {
  func.func @_bottleneck_kernel(%arg0: i32, %arg1: memref<1x16x512xf32, #tpu.memory_space<vmem>>, %arg2: memref<4x16xbf16, #tpu.memory_space<vmem>>, %arg3: memref<4x1xf32, #tpu.memory_space<vmem>>, %arg4: memref<4x36xbf16, #tpu.memory_space<vmem>>, %arg5: memref<4x1xf32, #tpu.memory_space<vmem>>, %arg6: memref<16x4xbf16, #tpu.memory_space<vmem>>, %arg7: memref<16x1xf32, #tpu.memory_space<vmem>>, %arg8: memref<1x16x512xf32, #tpu.memory_space<vmem>>) attributes {dimension_semantics = [#tpu.dimension_semantics<parallel>], iteration_bounds = array<i64: 2>, scalar_prefetch = 0 : i64, scratch_operands = 0 : i64, tpu.core_type = #tpu.core_type<tc>, window_params = [{transform_indices = @transform_0, window_bounds = array<i64: 1, 16, 512>}, {pipeline_mode = #tpu.pipeline_mode<synchronous>, transform_indices = @transform_1, window_bounds = array<i64: 4, 16>}, {pipeline_mode = #tpu.pipeline_mode<synchronous>, transform_indices = @transform_2, window_bounds = array<i64: 4, 1>}, {pipeline_mode = #tpu.pipeline_mode<synchronous>, transform_indices = @transform_3, window_bounds = array<i64: 4, 36>}, {pipeline_mode = #tpu.pipeline_mode<synchronous>, transform_indices = @transform_4, window_bounds = array<i64: 4, 1>}, {pipeline_mode = #tpu.pipeline_mode<synchronous>, transform_indices = @transform_5, window_bounds = array<i64: 16, 4>}, {pipeline_mode = #tpu.pipeline_mode<synchronous>, transform_indices = @transform_6, window_bounds = array<i64: 16, 1>}, {transform_indices = @transform_7, window_bounds = array<i64: 1, 16, 512>}]} {
    %c0 = arith.constant 0 : index
    %c0_0 = arith.constant 0 : index
    %c0_1 = arith.constant 0 : index
    %0 = vector.load %arg1[%c0, %c0_0, %c0_1] : memref<1x16x512xf32, #tpu.memory_space<vmem>>, vector<1x16x512xf32>
    %1 = vector.shape_cast %0 : vector<1x16x512xf32> to vector<16x512xf32>
    %c0_2 = arith.constant 0 : index
    %c0_3 = arith.constant 0 : index
    %2 = vector.load %arg2[%c0_2, %c0_3] : memref<4x16xbf16, #tpu.memory_space<vmem>>, vector<4x16xbf16>
    %3 = arith.truncf %1 : vector<16x512xf32> to vector<16x512xbf16>
    %cst = arith.constant dense<0.000000e+00> : vector<4x512xf32>
    %4 = tpu.matmul %2, %3, %cst {dimension_numbers = #tpu.dot_dimension_numbers<[1], [0], [0], [1], [0, 0, 1, 1], [], []>} : vector<4x16xbf16>, vector<16x512xbf16>, vector<4x512xf32> -> vector<4x512xf32>
    %c0_4 = arith.constant 0 : index
    %c0_5 = arith.constant 0 : index
    %5 = vector.load %arg3[%c0_4, %c0_5] : memref<4x1xf32, #tpu.memory_space<vmem>>, vector<4x1xf32>
    %6 = vector.broadcast %5 : vector<4x1xf32> to vector<4x512xf32>
    %7 = arith.addf %4, %6 : vector<4x512xf32>
    %cst_6 = arith.constant 0.000000e+00 : f32
    %8 = vector.broadcast %cst_6 : f32 to vector<4x512xf32>
    %9 = arith.maximumf %7, %8 : vector<4x512xf32>
    %10 = tpu.iota {dimensions = array<i32: 1>} : vector<1x512xi32>
    %c15_i32 = arith.constant 15 : i32
    %11 = vector.broadcast %c15_i32 : i32 to vector<1x512xi32>
    %12 = arith.andi %10, %11 : vector<1x512xi32>
    %c4_i32 = arith.constant 4 : i32
    %13 = vector.broadcast %c4_i32 : i32 to vector<1x512xi32>
    %14 = arith.shrsi %10, %13 : vector<1x512xi32>
    %c15_i32_7 = arith.constant 15 : i32
    %15 = vector.broadcast %c15_i32_7 : i32 to vector<1x512xi32>
    %16 = arith.andi %14, %15 : vector<1x512xi32>
    %c-1_i32 = arith.constant -1 : i32
    %17 = vector.broadcast %c-1_i32 : i32 to vector<1x512xi32>
    %18 = arith.addi %12, %17 : vector<1x512xi32>
    %c0_i32 = arith.constant 0 : i32
    %19 = vector.broadcast %c0_i32 : i32 to vector<1x512xi32>
    %20 = arith.cmpi sge, %18, %19 : vector<1x512xi32>
    %c-1_i32_8 = arith.constant -1 : i32
    %21 = vector.broadcast %c-1_i32_8 : i32 to vector<1x512xi32>
    %22 = arith.addi %12, %21 : vector<1x512xi32>
    %c16_i32 = arith.constant 16 : i32
    %23 = vector.broadcast %c16_i32 : i32 to vector<1x512xi32>
    %24 = arith.cmpi slt, %22, %23 : vector<1x512xi32>
    %25 = arith.andi %20, %24 : vector<1x512xi1>
    %c1_i32 = arith.constant 1 : i32
    %26 = vector.broadcast %c1_i32 : i32 to vector<1x512xi32>
    %27 = arith.addi %12, %26 : vector<1x512xi32>
    %c0_i32_9 = arith.constant 0 : i32
    %28 = vector.broadcast %c0_i32_9 : i32 to vector<1x512xi32>
    %29 = arith.cmpi sge, %27, %28 : vector<1x512xi32>
    %c1_i32_10 = arith.constant 1 : i32
    %30 = vector.broadcast %c1_i32_10 : i32 to vector<1x512xi32>
    %31 = arith.addi %12, %30 : vector<1x512xi32>
    %c16_i32_11 = arith.constant 16 : i32
    %32 = vector.broadcast %c16_i32_11 : i32 to vector<1x512xi32>
    %33 = arith.cmpi slt, %31, %32 : vector<1x512xi32>
    %34 = arith.andi %29, %33 : vector<1x512xi1>
    %c-1_i32_12 = arith.constant -1 : i32
    %35 = vector.broadcast %c-1_i32_12 : i32 to vector<1x512xi32>
    %36 = arith.addi %16, %35 : vector<1x512xi32>
    %c0_i32_13 = arith.constant 0 : i32
    %37 = vector.broadcast %c0_i32_13 : i32 to vector<1x512xi32>
    %38 = arith.cmpi sge, %36, %37 : vector<1x512xi32>
    %c-1_i32_14 = arith.constant -1 : i32
    %39 = vector.broadcast %c-1_i32_14 : i32 to vector<1x512xi32>
    %40 = arith.addi %16, %39 : vector<1x512xi32>
    %c16_i32_15 = arith.constant 16 : i32
    %41 = vector.broadcast %c16_i32_15 : i32 to vector<1x512xi32>
    %42 = arith.cmpi slt, %40, %41 : vector<1x512xi32>
    %43 = arith.andi %38, %42 : vector<1x512xi1>
    %c1_i32_16 = arith.constant 1 : i32
    %44 = vector.broadcast %c1_i32_16 : i32 to vector<1x512xi32>
    %45 = arith.addi %16, %44 : vector<1x512xi32>
    %c0_i32_17 = arith.constant 0 : i32
    %46 = vector.broadcast %c0_i32_17 : i32 to vector<1x512xi32>
    %47 = arith.cmpi sge, %45, %46 : vector<1x512xi32>
    %c1_i32_18 = arith.constant 1 : i32
    %48 = vector.broadcast %c1_i32_18 : i32 to vector<1x512xi32>
    %49 = arith.addi %16, %48 : vector<1x512xi32>
    %c16_i32_19 = arith.constant 16 : i32
    %50 = vector.broadcast %c16_i32_19 : i32 to vector<1x512xi32>
    %51 = arith.cmpi slt, %49, %50 : vector<1x512xi32>
    %52 = arith.andi %47, %51 : vector<1x512xi1>
    %c17_i32 = arith.constant 17 : i32
    %53 = tpu.dynamic_rotate %9 by %c17_i32 dim 1 : vector<4x512xf32>, i32 -> vector<4x512xf32>
    %54 = arith.andi %43, %25 : vector<1x512xi1>
    %cst_20 = arith.constant 0.000000e+00 : f32
    %55 = vector.shape_cast %54 : vector<1x512xi1> to vector<1x512xi1>
    %56 = vector.broadcast %55 : vector<1x512xi1> to vector<4x512xi1>
    %57 = vector.broadcast %cst_20 : f32 to vector<4x512xf32>
    %58 = arith.select %56, %53, %57 : vector<4x512xi1>, vector<4x512xf32>
    %c16_i32_21 = arith.constant 16 : i32
    %59 = tpu.dynamic_rotate %9 by %c16_i32_21 dim 1 : vector<4x512xf32>, i32 -> vector<4x512xf32>
    %cst_22 = arith.constant 0.000000e+00 : f32
    %60 = vector.shape_cast %43 : vector<1x512xi1> to vector<1x512xi1>
    %61 = vector.broadcast %60 : vector<1x512xi1> to vector<4x512xi1>
    %62 = vector.broadcast %cst_22 : f32 to vector<4x512xf32>
    %63 = arith.select %61, %59, %62 : vector<4x512xi1>, vector<4x512xf32>
    %c15_i32_23 = arith.constant 15 : i32
    %64 = tpu.dynamic_rotate %9 by %c15_i32_23 dim 1 : vector<4x512xf32>, i32 -> vector<4x512xf32>
    %65 = arith.andi %43, %34 : vector<1x512xi1>
    %cst_24 = arith.constant 0.000000e+00 : f32
    %66 = vector.shape_cast %65 : vector<1x512xi1> to vector<1x512xi1>
    %67 = vector.broadcast %66 : vector<1x512xi1> to vector<4x512xi1>
    %68 = vector.broadcast %cst_24 : f32 to vector<4x512xf32>
    %69 = arith.select %67, %64, %68 : vector<4x512xi1>, vector<4x512xf32>
    %c1_i32_25 = arith.constant 1 : i32
    %70 = tpu.dynamic_rotate %9 by %c1_i32_25 dim 1 : vector<4x512xf32>, i32 -> vector<4x512xf32>
    %cst_26 = arith.constant 0.000000e+00 : f32
    %71 = vector.shape_cast %25 : vector<1x512xi1> to vector<1x512xi1>
    %72 = vector.broadcast %71 : vector<1x512xi1> to vector<4x512xi1>
    %73 = vector.broadcast %cst_26 : f32 to vector<4x512xf32>
    %74 = arith.select %72, %70, %73 : vector<4x512xi1>, vector<4x512xf32>
    %c511_i32 = arith.constant 511 : i32
    %75 = tpu.dynamic_rotate %9 by %c511_i32 dim 1 : vector<4x512xf32>, i32 -> vector<4x512xf32>
    %cst_27 = arith.constant 0.000000e+00 : f32
    %76 = vector.shape_cast %34 : vector<1x512xi1> to vector<1x512xi1>
    %77 = vector.broadcast %76 : vector<1x512xi1> to vector<4x512xi1>
    %78 = vector.broadcast %cst_27 : f32 to vector<4x512xf32>
    %79 = arith.select %77, %75, %78 : vector<4x512xi1>, vector<4x512xf32>
    %c497_i32 = arith.constant 497 : i32
    %80 = tpu.dynamic_rotate %9 by %c497_i32 dim 1 : vector<4x512xf32>, i32 -> vector<4x512xf32>
    %81 = arith.andi %52, %25 : vector<1x512xi1>
    %cst_28 = arith.constant 0.000000e+00 : f32
    %82 = vector.shape_cast %81 : vector<1x512xi1> to vector<1x512xi1>
    %83 = vector.broadcast %82 : vector<1x512xi1> to vector<4x512xi1>
    %84 = vector.broadcast %cst_28 : f32 to vector<4x512xf32>
    %85 = arith.select %83, %80, %84 : vector<4x512xi1>, vector<4x512xf32>
    %c496_i32 = arith.constant 496 : i32
    %86 = tpu.dynamic_rotate %9 by %c496_i32 dim 1 : vector<4x512xf32>, i32 -> vector<4x512xf32>
    %cst_29 = arith.constant 0.000000e+00 : f32
    %87 = vector.shape_cast %52 : vector<1x512xi1> to vector<1x512xi1>
    %88 = vector.broadcast %87 : vector<1x512xi1> to vector<4x512xi1>
    %89 = vector.broadcast %cst_29 : f32 to vector<4x512xf32>
    %90 = arith.select %88, %86, %89 : vector<4x512xi1>, vector<4x512xf32>
    %c495_i32 = arith.constant 495 : i32
    %91 = tpu.dynamic_rotate %9 by %c495_i32 dim 1 : vector<4x512xf32>, i32 -> vector<4x512xf32>
    %92 = arith.andi %52, %34 : vector<1x512xi1>
    %cst_30 = arith.constant 0.000000e+00 : f32
    %93 = vector.shape_cast %92 : vector<1x512xi1> to vector<1x512xi1>
    %94 = vector.broadcast %93 : vector<1x512xi1> to vector<4x512xi1>
    %95 = vector.broadcast %cst_30 : f32 to vector<4x512xf32>
    %96 = arith.select %94, %91, %95 : vector<4x512xi1>, vector<4x512xf32>
    %97 = tpu.concatenate %58, %63, %69, %74, %9, %79, %85, %90, %96 in 0 : vector<4x512xf32>, vector<4x512xf32>, vector<4x512xf32>, vector<4x512xf32>, vector<4x512xf32>, vector<4x512xf32>, vector<4x512xf32>, vector<4x512xf32>, vector<4x512xf32> -> vector<36x512xf32>
    %98 = arith.truncf %97 : vector<36x512xf32> to vector<36x512xbf16>
    %c0_31 = arith.constant 0 : index
    %c0_32 = arith.constant 0 : index
    %99 = vector.load %arg4[%c0_31, %c0_32] : memref<4x36xbf16, #tpu.memory_space<vmem>>, vector<4x36xbf16>
    %cst_33 = arith.constant dense<0.000000e+00> : vector<4x512xf32>
    %100 = tpu.matmul %99, %98, %cst_33 {dimension_numbers = #tpu.dot_dimension_numbers<[1], [0], [0], [1], [0, 0, 1, 1], [], []>} : vector<4x36xbf16>, vector<36x512xbf16>, vector<4x512xf32> -> vector<4x512xf32>
    %c0_34 = arith.constant 0 : index
    %c0_35 = arith.constant 0 : index
    %101 = vector.load %arg5[%c0_34, %c0_35] : memref<4x1xf32, #tpu.memory_space<vmem>>, vector<4x1xf32>
    %102 = vector.broadcast %101 : vector<4x1xf32> to vector<4x512xf32>
    %103 = arith.addf %100, %102 : vector<4x512xf32>
    %cst_36 = arith.constant 0.000000e+00 : f32
    %104 = vector.broadcast %cst_36 : f32 to vector<4x512xf32>
    %105 = arith.maximumf %103, %104 : vector<4x512xf32>
    %c0_37 = arith.constant 0 : index
    %c0_38 = arith.constant 0 : index
    %106 = vector.load %arg6[%c0_37, %c0_38] : memref<16x4xbf16, #tpu.memory_space<vmem>>, vector<16x4xbf16>
    %107 = arith.truncf %105 : vector<4x512xf32> to vector<4x512xbf16>
    %cst_39 = arith.constant dense<0.000000e+00> : vector<16x512xf32>
    %108 = tpu.matmul %106, %107, %cst_39 {dimension_numbers = #tpu.dot_dimension_numbers<[1], [0], [0], [1], [0, 0, 1, 1], [], []>} : vector<16x4xbf16>, vector<4x512xbf16>, vector<16x512xf32> -> vector<16x512xf32>
    %c0_40 = arith.constant 0 : index
    %c0_41 = arith.constant 0 : index
    %109 = vector.load %arg7[%c0_40, %c0_41] : memref<16x1xf32, #tpu.memory_space<vmem>>, vector<16x1xf32>
    %110 = vector.broadcast %109 : vector<16x1xf32> to vector<16x512xf32>
    %111 = arith.addf %108, %110 : vector<16x512xf32>
    %112 = arith.addf %111, %1 : vector<16x512xf32>
    %cst_42 = arith.constant 0.000000e+00 : f32
    %113 = vector.broadcast %cst_42 : f32 to vector<16x512xf32>
    %114 = arith.maximumf %112, %113 : vector<16x512xf32>
    %c0_43 = arith.constant 0 : index
    %c0_44 = arith.constant 0 : index
    %c0_45 = arith.constant 0 : index
    %115 = vector.load %arg8[%c0_43, %c0_44, %c0_45] : memref<1x16x512xf32, #tpu.memory_space<vmem>>, vector<1x16x512xf32>
    %116 = vector.shape_cast %115 : vector<1x16x512xf32> to vector<16x512xf32>
    %117 = vector.shape_cast %114 : vector<16x512xf32> to vector<1x16x512xf32>
    tpu.vector_store %arg8[%c0_43, %c0_44, %c0_45], %117 {strides = array<i32>} : memref<1x16x512xf32, #tpu.memory_space<vmem>>, vector<1x16x512xf32>,
    return
  }
  func.func @transform_0(%arg0: i32) -> (i32, i32, i32) {
    %c0_i32 = arith.constant 0 : i32
    %c0_i32_0 = arith.constant 0 : i32
    %c0_i32_1 = arith.constant 0 : i32
    return %arg0, %c0_i32, %c0_i32_0 : i32, i32, i32
  }
  func.func @transform_1(%arg0: i32) -> (i32, i32) {
    %c0_i32 = arith.constant 0 : i32
    %c0_i32_0 = arith.constant 0 : i32
    %c0_i32_1 = arith.constant 0 : i32
    return %c0_i32, %c0_i32_0 : i32, i32
  }
  func.func @transform_2(%arg0: i32) -> (i32, i32) {
    %c0_i32 = arith.constant 0 : i32
    %c0_i32_0 = arith.constant 0 : i32
    %c0_i32_1 = arith.constant 0 : i32
    return %c0_i32, %c0_i32_0 : i32, i32
  }
  func.func @transform_3(%arg0: i32) -> (i32, i32) {
    %c0_i32 = arith.constant 0 : i32
    %c0_i32_0 = arith.constant 0 : i32
    %c0_i32_1 = arith.constant 0 : i32
    return %c0_i32, %c0_i32_0 : i32, i32
  }
  func.func @transform_4(%arg0: i32) -> (i32, i32) {
    %c0_i32 = arith.constant 0 : i32
    %c0_i32_0 = arith.constant 0 : i32
    %c0_i32_1 = arith.constant 0 : i32
    return %c0_i32, %c0_i32_0 : i32, i32
  }
  func.func @transform_5(%arg0: i32) -> (i32, i32) {
    %c0_i32 = arith.constant 0 : i32
    %c0_i32_0 = arith.constant 0 : i32
    %c0_i32_1 = arith.constant 0 : i32
    return %c0_i32, %c0_i32_0 : i32, i32
  }
  func.func @transform_6(%arg0: i32) -> (i32, i32) {
    %c0_i32 = arith.constant 0 : i32
    %c0_i32_0 = arith.constant 0 : i32
    %c0_i32_1 = arith.constant 0 : i32
    return %c0_i32, %c0_i32_0 : i32, i32
  }
  func.func @transform_7(%arg0: i32) -> (i32, i32, i32) {
    %c0_i32 = arith.constant 0 : i32
    %c0_i32_0 = arith.constant 0 : i32
    %c0_i32_1 = arith.constant 0 : i32
    return %arg0, %c0_i32, %c0_i32_0 : i32, i32, i32
  }
}

</mosaic_0001>

<llo_original>
// kernel: bottleneck_forward.1
$region0: #{bottleneck_forward.1}
  #allocation0 [shape = 'u32[]', space=smem, size = 0x4, offset = 0x4, fixed_abs, tag = 'smem constant byte address 0x4 - core index']
  #allocation1 [shape = 'u32[144,128]{1,0:T(1,128)}', space=vmem, size = 0x12000, scoped, tag = 'internal scratch']
  %s0 = inlined_call_operand.vmem [shape: f32[2,16,512], index: 0, kind: input, shape index: {}]
  %s1 = inlined_call_operand.vmem [shape: bf16[4,16], index: 1, kind: input, shape index: {}]
  %s2 = inlined_call_operand.vmem [shape: f32[4,1], index: 2, kind: input, shape index: {}]
  %s3 = inlined_call_operand.vmem [shape: bf16[4,36], index: 3, kind: input, shape index: {}]
  %s4 = inlined_call_operand.vmem [shape: f32[4,1], index: 4, kind: input, shape index: {}]
  %s5 = inlined_call_operand.vmem [shape: bf16[16,4], index: 5, kind: input, shape index: {}]
  %s6 = inlined_call_operand.vmem [shape: f32[16,1], index: 6, kind: input, shape index: {}]
  %s7 = inlined_call_operand.vmem [shape: f32[2,16,512], index: 7, kind: output, shape index: {}]
  %s8 = sld [smem:[#allocation0]]
  $region61: #{bottleneck_forward.1} parent=0
    _
  %s10 = ssub.s32 1, %s8
  %s11 = scalar_select 0, %s10, %s8
  loop: start=0, step=1, limit=4
  $region2: #{bottleneck_forward.1} parent=0 // loop_pre_header
    _
  $region3: #{bottleneck_forward.1} parent=0 // loop_header
    %s13 = sphi 0, %s17
    %p14 = scmp.ge.s32.totalorder %s13, 4
    %s23 = sphi 0, %s25
    %s26 = sphi 0, %s23
    %s27 = sphi 0, %s26
    %s43 = sphi 0, %s27
    %s47 = sphi 0, %s47
    %s49 = sphi 0, %s47
    %s50 = sphi 0, %s49
    %s64 = sphi 0, %s50
    %s68 = sphi 0, %s68
    %s70 = sphi 0, %s68
    %s71 = sphi 0, %s70
    %s85 = sphi 0, %s71
    %s89 = sphi 0, %s89
    %s91 = sphi 0, %s89
    %s92 = sphi 0, %s91
    %s106 = sphi 0, %s92
    %s110 = sphi 0, %s110
    %s112 = sphi 0, %s110
    %s113 = sphi 0, %s112
    %s127 = sphi 0, %s113
    %s131 = sphi 0, %s131
    %s133 = sphi 0, %s131
    %s134 = sphi 0, %s133
    %s148 = sphi 0, %s134
    %s152 = sphi 0, %s152
    %s154 = sphi 0, %s152
    %s155 = sphi 0, %s154
    %s169 = sphi 0, %s155
    %s175 = sphi 0, %s177
    %s178 = sphi 0, %s175
    %s179 = sphi 0, %s178
    %s195 = sphi 0, %s179
  $region4: #{bottleneck_forward.1} parent=0 // loop_header_branch
    %16 = sbr.rel (%p14) target = $region8
  $region5: #{bottleneck_forward.1} parent=0 // loop_body
    %s18 = ssub.s32 %s13, 1
    %s19 = ssub.s32 %s13, 2
    %s20 = sadd.s32 %s13, 1
    %s21 = ssub.s32 %s13, %s20
    %p22 = scmp.eq.s32.totalorder %s21, 0
    %s24 = sadd.s32 %s23, 1
    %s25 = scalar_select %p22, %s23, %s24
    %p28 = pneg %p22
    %p29 = scmp.eq.s32.totalorder %s13, 1
    %p30 = por %p28, %p29
    %p31 = scmp.ne.s32.totalorder %s23, %s26
    %p32 = scmp.eq.s32.totalorder %s13, 0
    %p33 = por %p31, %p32
    %p34 = scmp.ne.s32.totalorder %s23, %s26
    %p35 = scmp.eq.s32.totalorder %s18, 1
    %p36 = por %p34, %p35
    %p37 = scmp.ne.s32.totalorder %s26, %s27
    %p38 = scmp.eq.s32.totalorder %s18, 0
    %p39 = por %p37, %p38
    %p40 = scmp.ne.s32.totalorder %s26, %s27
    %p41 = scmp.eq.s32.totalorder %s19, 1
    %p42 = por %p40, %p41
    %p44 = scmp.ne.s32.totalorder %s27, %s43
    %p45 = scmp.eq.s32.totalorder %s19, 0
    %p46 = por %p44, %p45
    %s48 = sadd.s32 %s47, 1
    %p51 = scmp.eq.s32.totalorder %s13, 1
    %p52 = scmp.ne.s32.totalorder %s47, %s49
    %p53 = scmp.eq.s32.totalorder %s13, 0
    %p54 = por %p52, %p53
    %p55 = scmp.ne.s32.totalorder %s47, %s49
    %p56 = scmp.eq.s32.totalorder %s18, 1
    %p57 = por %p55, %p56
    %p58 = scmp.ne.s32.totalorder %s49, %s50
    %p59 = scmp.eq.s32.totalorder %s18, 0
    %p60 = por %p58, %p59
    %p61 = scmp.ne.s32.totalorder %s49, %s50
    %p62 = scmp.eq.s32.totalorder %s19, 1
    %p63 = por %p61, %p62
    %p65 = scmp.ne.s32.totalorder %s50, %s64
    %p66 = scmp.eq.s32.totalorder %s19, 0
    %p67 = por %p65, %p66
    %s69 = sadd.s32 %s68, 1
    %p72 = scmp.eq.s32.totalorder %s13, 1
    %p73 = scmp.ne.s32.totalorder %s68, %s70
    %p74 = scmp.eq.s32.totalorder %s13, 0
    %p75 = por %p73, %p74
    %p76 = scmp.ne.s32.totalorder %s68, %s70
    %p77 = scmp.eq.s32.totalorder %s18, 1
    %p78 = por %p76, %p77
    %p79 = scmp.ne.s32.totalorder %s70, %s71
    %p80 = scmp.eq.s32.totalorder %s18, 0
    %p81 = por %p79, %p80
    %p82 = scmp.ne.s32.totalorder %s70, %s71
    %p83 = scmp.eq.s32.totalorder %s19, 1
    %p84 = por %p82, %p83
    %p86 = scmp.ne.s32.totalorder %s71, %s85
    %p87 = scmp.eq.s32.totalorder %s19, 0
    %p88 = por %p86, %p87
    %s90 = sadd.s32 %s89, 1
    %p93 = scmp.eq.s32.totalorder %s13, 1
    %p94 = scmp.ne.s32.totalorder %s89, %s91
    %p95 = scmp.eq.s32.totalorder %s13, 0
    %p96 = por %p94, %p95
    %p97 = scmp.ne.s32.totalorder %s89, %s91
    %p98 = scmp.eq.s32.totalorder %s18, 1
    %p99 = por %p97, %p98
    %p100 = scmp.ne.s32.totalorder %s91, %s92
    %p101 = scmp.eq.s32.totalorder %s18, 0
    %p102 = por %p100, %p101
    %p103 = scmp.ne.s32.totalorder %s91, %s92
    %p104 = scmp.eq.s32.totalorder %s19, 1
    %p105 = por %p103, %p104
    %p107 = scmp.ne.s32.totalorder %s92, %s106
    %p108 = scmp.eq.s32.totalorder %s19, 0
    %p109 = por %p107, %p108
    %s111 = sadd.s32 %s110, 1
    %p114 = scmp.eq.s32.totalorder %s13, 1
    %p115 = scmp.ne.s32.totalorder %s110, %s112
    %p116 = scmp.eq.s32.totalorder %s13, 0
    %p117 = por %p115, %p116
    %p118 = scmp.ne.s32.totalorder %s110, %s112
    %p119 = scmp.eq.s32.totalorder %s18, 1
    %p120 = por %p118, %p119
    %p121 = scmp.ne.s32.totalorder %s112, %s113
    %p122 = scmp.eq.s32.totalorder %s18, 0
    %p123 = por %p121, %p122
    %p124 = scmp.ne.s32.totalorder %s112, %s113
    %p125 = scmp.eq.s32.totalorder %s19, 1
    %p126 = por %p124, %p125
    %p128 = scmp.ne.s32.totalorder %s113, %s127
    %p129 = scmp.eq.s32.totalorder %s19, 0
    %p130 = por %p128, %p129
    %s132 = sadd.s32 %s131, 1
    %p135 = scmp.eq.s32.totalorder %s13, 1
    %p136 = scmp.ne.s32.totalorder %s131, %s133
    %p137 = scmp.eq.s32.totalorder %s13, 0
    %p138 = por %p136, %p137
    %p139 = scmp.ne.s32.totalorder %s131, %s133
    %p140 = scmp.eq.s32.totalorder %s18, 1
    %p141 = por %p139, %p140
    %p142 = scmp.ne.s32.totalorder %s133, %s134
    %p143 = scmp.eq.s32.totalorder %s18, 0
    %p144 = por %p142, %p143
    %p145 = scmp.ne.s32.totalorder %s133, %s134
    %p146 = scmp.eq.s32.totalorder %s19, 1
    %p147 = por %p145, %p146
    %p149 = scmp.ne.s32.totalorder %s134, %s148
    %p150 = scmp.eq.s32.totalorder %s19, 0
    %p151 = por %p149, %p150
    %s153 = sadd.s32 %s152, 1
    %p156 = scmp.eq.s32.totalorder %s13, 1
    %p157 = scmp.ne.s32.totalorder %s152, %s154
    %p158 = scmp.eq.s32.totalorder %s13, 0
    %p159 = por %p157, %p158
    %p160 = scmp.ne.s32.totalorder %s152, %s154
    %p161 = scmp.eq.s32.totalorder %s18, 1
    %p162 = por %p160, %p161
    %p163 = scmp.ne.s32.totalorder %s154, %s155
    %p164 = scmp.eq.s32.totalorder %s18, 0
    %p165 = por %p163, %p164
    %p166 = scmp.ne.s32.totalorder %s154, %s155
    %p167 = scmp.eq.s32.totalorder %s19, 1
    %p168 = por %p166, %p167
    %p170 = scmp.ne.s32.totalorder %s155, %s169
    %p171 = scmp.eq.s32.totalorder %s19, 0
    %p172 = por %p170, %p171
    %s173 = ssub.s32 %s13, %s20
    %p174 = scmp.eq.s32.totalorder %s173, 0
    %s176 = sadd.s32 %s175, 1
    %s177 = scalar_select %p174, %s175, %s176
    %p180 = pneg %p174
    %p181 = scmp.eq.s32.totalorder %s13, 1
    %p182 = por %p180, %p181
    %p183 = scmp.ne.s32.totalorder %s175, %s178
    %p184 = scmp.eq.s32.totalorder %s13, 0
    %p185 = por %p183, %p184
    %p186 = scmp.ne.s32.totalorder %s175, %s178
    %p187 = scmp.eq.s32.totalorder %s18, 1
    %p188 = por %p186, %p187
    %p189 = scmp.ne.s32.totalorder %s178, %s179
    %p190 = scmp.eq.s32.totalorder %s18, 0
    %p191 = por %p189, %p190
    %p192 = scmp.ne.s32.totalorder %s178, %s179
    %p193 = scmp.eq.s32.totalorder %s19, 1
    %p194 = por %p192, %p193
    %p196 = scmp.ne.s32.totalorder %s179, %s195
    %p197 = scmp.eq.s32.totalorder %s19, 0
    %p198 = por %p196, %p197
    %p199 = scmp.le.s32.totalorder 1, %s13
    %p200 = scmp.lt.s32.totalorder %s13, 3
    %p201 = pnand %p199, %p200
    %p202 = pneg %p201
    // Predicated region
    $region9: #{bottleneck_forward.1} parent=5 // pred_check
      _
    $region10: #{bottleneck_forward.1} parent=5 // pred_check_branch
      %204 = sbr.rel (%p201) target = $region12
    $region11: #{bottleneck_forward.1} parent=5 // pred_region
      %s205 = ssub.s32 %s13, 1
      // Predicated region
      $region13: #{bottleneck_forward.1} parent=11 // pred_check
        %p206 = pneg %p60
      $region14: #{bottleneck_forward.1} parent=11 // pred_check_branch
        %208 = sbr.rel (%p206) target = $region16
      $region15: #{bottleneck_forward.1} parent=11 // pred_region
        _
      $region16: #{bottleneck_forward.1} parent=11 // pred_fallthru
        _
      // Predicated region
      $region17: #{bottleneck_forward.1} parent=11 // pred_check
        %p209 = pneg %p81
      $region18: #{bottleneck_forward.1} parent=11 // pred_check_branch
        %211 = sbr.rel (%p209) target = $region20
      $region19: #{bottleneck_forward.1} parent=11 // pred_region
        _
      $region20: #{bottleneck_forward.1} parent=11 // pred_fallthru
        _
      // Predicated region
      $region21: #{bottleneck_forward.1} parent=11 // pred_check
        %p212 = pneg %p102
      $region22: #{bottleneck_forward.1} parent=11 // pred_check_branch
        %214 = sbr.rel (%p212) target = $region24
      $region23: #{bottleneck_forward.1} parent=11 // pred_region
        _
      $region24: #{bottleneck_forward.1} parent=11 // pred_fallthru
        _
      // Predicated region
      $region25: #{bottleneck_forward.1} parent=11 // pred_check
        %p215 = pneg %p123
      $region26: #{bottleneck_forward.1} parent=11 // pred_check_branch
        %217 = sbr.rel (%p215) target = $region28
      $region27: #{bottleneck_forward.1} parent=11 // pred_region
        _
      $region28: #{bottleneck_forward.1} parent=11 // pred_fallthru
        _
      // Predicated region
      $region29: #{bottleneck_forward.1} parent=11 // pred_check
        %p218 = pneg %p144
      $region30: #{bottleneck_forward.1} parent=11 // pred_check_branch
        %220 = sbr.rel (%p218) target = $region32
      $region31: #{bottleneck_forward.1} parent=11 // pred_region
        _
      $region32: #{bottleneck_forward.1} parent=11 // pred_fallthru
        _
      // Predicated region
      $region33: #{bottleneck_forward.1} parent=11 // pred_check
        %p221 = pneg %p165
      $region34: #{bottleneck_forward.1} parent=11 // pred_check_branch
        %223 = sbr.rel (%p221) target = $region36
      $region35: #{bottleneck_forward.1} parent=11 // pred_region
        _
      $region36: #{bottleneck_forward.1} parent=11 // pred_fallthru
        _
    $region12: #{bottleneck_forward.1} parent=5 // pred_fallthru
      _
    %p224 = scmp.lt.s32.totalorder %s13, 2
    // Predicated region
    $region37: #{bottleneck_forward.1} parent=5 // pred_check
      %p225 = pneg %p224
    $region38: #{bottleneck_forward.1} parent=5 // pred_check_branch
      %227 = sbr.rel (%p225) target = $region40
    $region39: #{bottleneck_forward.1} parent=5 // pred_region
      // Predicated region
      $region41: #{bottleneck_forward.1} parent=39 // pred_check
        %p228 = pneg %p33
      $region42: #{bottleneck_forward.1} parent=39 // pred_check_branch
        %230 = sbr.rel (%p228) target = $region44
      $region43: #{bottleneck_forward.1} parent=39 // pred_region
        %p231 = scmp.lt.s32.totalorder %s13, 1
        %s232 = scalar_select %p231, %s13, 1
        %s233 = smul.addr %s232, 8
        %s234 = smul.addr %s233, 8
        %s235 = scalar_lea.vmem %s0, %s234
      $region44: #{bottleneck_forward.1} parent=39 // pred_fallthru
        _
    $region40: #{bottleneck_forward.1} parent=5 // pred_fallthru
      _
    %p236 = scmp.le.s32.totalorder 1, %s13
    %p237 = scmp.lt.s32.totalorder %s13, 3
    %p238 = pnand %p236, %p237
    %p239 = pneg %p238
    // Predicated region
    $region45: #{bottleneck_forward.1} parent=5 // pred_check
      _
    $region46: #{bottleneck_forward.1} parent=5 // pred_check_branch
      %241 = sbr.rel (%p238) target = $region48
    $region47: #{bottleneck_forward.1} parent=5 // pred_region
      %s242 = ssub.s32 %s13, 1
      %p243 = scmp.lt.s32.totalorder %s18, 1
      %s244 = scalar_select %p243, %s18, 1
      %s245 = smul.addr %s244, 8
      %s246 = smul.addr %s245, 8
      %s247 = scalar_lea.vmem %s0, %s246
      %p248 = pneg %p39
      %p249 = pneg %p36
      %p250 = pneg %p60
      %p251 = pneg %p57
      %p252 = pneg %p81
      %p253 = pneg %p78
      %p254 = pneg %p102
      %p255 = pneg %p99
      %p256 = pneg %p123
      %p257 = pneg %p120
      %p258 = pneg %p144
      %p259 = pneg %p141
      %p260 = pneg %p165
      %p261 = pneg %p162
      %p262 = pneg %p191
      %p263 = pneg %p188
      %p264 = scmp.lt.s32.totalorder %s18, 1
      %s265 = scalar_select %p264, %s18, 1
      %s266 = smul.addr %s265, 8
      %s267 = smul.addr %s266, 8
      %s268 = scalar_lea.vmem %s7, %s267
      %p269 = scmp.lt.s32.totalorder %s18, 1
      %s270 = scalar_select %p269, %s18, 1
      %s271 = smul.addr %s270, 8
      %s272 = smul.addr %s271, 8
      %s273 = scalar_lea.vmem %s0, %s272
      %p274 = scmp.lt.s32.totalorder %s18, 1
      %s275 = scalar_select %p274, %s18, 1
      %s276 = smul.addr %s275, 8
      %s277 = smul.addr %s276, 8
      %s278 = scalar_lea.vmem %s7, %s277
      %v280 = vld [vmem:[%s273] sm:$0xff]
      %v281 = vld [vmem:[%s273 + $0x8] sm:$0xff]
      %v282 = vld [vmem:[%s273 + $0x10] sm:$0xff]
      %v283 = vld [vmem:[%s273 + $0x18] sm:$0xff]
      %v284 = vld [vmem:[%s273 + $0x20] sm:$0xff]
      %v285 = vld [vmem:[%s273 + $0x28] sm:$0xff]
      %v286 = vld [vmem:[%s273 + $0x30] sm:$0xff]
      %v287 = vld [vmem:[%s273 + $0x38] sm:$0xff]
      %v288 = vld [vmem:[%s1] sm:$0x3]
      %v289 = vpack.c.bf16 %v284, %v280
      %v290 = vpack.c.bf16 %v285, %v281
      %v291 = vpack.c.bf16 %v286, %v282
      %v292 = vpack.c.bf16 %v287, %v283
      %v293 = vld [vmem:[%s2] sm:$0xf]
      %295 = vset.pattern.permute.xlu0 0
      %296 = vperm.xlu0 %295, %v293
      %v297 = vpop.permute.xlu0 %296
      %vm299 = vcmask 130048
      %v301 = vsel %vm299, %v288, 0
      %303 = vmatprep.subr.bf16.mxu0 0
      %304 = vmatpush1.bf16.msra.mxu0 0
      %305 = vmatprep.subr.bf16.mxu0 0
      %306 = vmatpush1.bf16.msra.mxu0 0
      %307 = vmatprep.subr.bf16.mxu0 0
      %308 = vmatpush1.bf16.msra.mxu0 0
      %309 = vmatprep.subr.bf16.mxu0 0
      %310 = vmatpush1.bf16.msra.mxu0 0
      %311 = vmatprep.subr.bf16.mxu0 0
      %312 = vmatpush1.bf16.msra.mxu0 0
      %313 = vmatprep.subr.bf16.mxu0 0
      %314 = vmatpush1.bf16.msra.mxu0 0
      %315 = vmatprep.subr.bf16.mxu0 0
      %316 = vmatpush1.bf16.msra.mxu0 0
      %317 = vmatprep.subr.bf16.mxu0 %v290
      %318 = vmatpush1.bf16.msra.mxu0 %v289
      %319 = vmatprep.subr.bf16.mxu0 0
      %320 = vmatpush2.bf16.msra.mxu0 0
      %321 = vmatprep.subr.bf16.mxu0 0
      %322 = vmatpush2.bf16.msra.mxu0 0
      %323 = vmatprep.subr.bf16.mxu0 0
      %324 = vmatpush2.bf16.msra.mxu0 0
      %325 = vmatprep.subr.bf16.mxu0 0
      %326 = vmatpush2.bf16.msra.mxu0 0
      %327 = vmatprep.subr.bf16.mxu0 0
      %328 = vmatpush2.bf16.msra.mxu0 0
      %329 = vmatprep.subr.bf16.mxu0 0
      %330 = vmatpush2.bf16.msra.mxu0 0
      %331 = vmatprep.subr.bf16.mxu0 0
      %332 = vmatpush2.bf16.msra.mxu0 0
      %333 = vmatprep.subr.bf16.mxu0 0
      %334 = vmatpush2.bf16.msra.mxu0 0
      %335 = vmatprep.mubr.bf16.mxu0 0
      %336 = vmatmul.mubr.bf16.gmra.mxu0 %v301
      %v337 = vpop.f32.mrf.mxu0
      %v338 = vadd.f32 %v297, %v337
      %v339 = vpop.f32.mrf.mxu0
      %v340 = vadd.f32 %v297, %v339
      %v341 = vpop.f32.mrf.mxu0
      %v342 = vpop.f32.mrf.mxu0
      %343 = vdwg.mxu0
      %344 = vmatprep.subr.bf16.mxu0 0
      %345 = vmatpush1.bf16.msra.mxu0 0
      %346 = vmatprep.subr.bf16.mxu0 0
      %347 = vmatpush1.bf16.msra.mxu0 0
      %348 = vmatprep.subr.bf16.mxu0 0
      %349 = vmatpush1.bf16.msra.mxu0 0
      %350 = vmatprep.subr.bf16.mxu0 0
      %351 = vmatpush1.bf16.msra.mxu0 0
      %352 = vmatprep.subr.bf16.mxu0 0
      %353 = vmatpush1.bf16.msra.mxu0 0
      %354 = vmatprep.subr.bf16.mxu0 0
      %355 = vmatpush1.bf16.msra.mxu0 0
      %356 = vmatprep.subr.bf16.mxu0 0
      %357 = vmatpush1.bf16.msra.mxu0 0
      %358 = vmatprep.subr.bf16.mxu0 %v292
      %359 = vmatpush1.bf16.msra.mxu0 %v291
      %360 = vmatprep.subr.bf16.mxu0 0
      %361 = vmatpush2.bf16.msra.mxu0 0
      %362 = vmatprep.subr.bf16.mxu0 0
      %363 = vmatpush2.bf16.msra.mxu0 0
      %364 = vmatprep.subr.bf16.mxu0 0
      %365 = vmatpush2.bf16.msra.mxu0 0
      %366 = vmatprep.subr.bf16.mxu0 0
      %367 = vmatpush2.bf16.msra.mxu0 0
      %368 = vmatprep.subr.bf16.mxu0 0
      %369 = vmatpush2.bf16.msra.mxu0 0
      %370 = vmatprep.subr.bf16.mxu0 0
      %371 = vmatpush2.bf16.msra.mxu0 0
      %372 = vmatprep.subr.bf16.mxu0 0
      %373 = vmatpush2.bf16.msra.mxu0 0
      %374 = vmatprep.subr.bf16.mxu0 0
      %375 = vmatpush2.bf16.msra.mxu0 0
      %376 = vmatprep.mubr.bf16.mxu0 0
      %377 = vmatmul.mubr.bf16.gmra.mxu0 %v301
      %v378 = vpop.f32.mrf.mxu0
      %v379 = vadd.f32 %v297, %v378
      %v380 = vpop.f32.mrf.mxu0
      %v381 = vadd.f32 %v297, %v380
      %v382 = vpop.f32.mrf.mxu0
      %v383 = vpop.f32.mrf.mxu0
      %384 = vdwg.mxu0
      %v385 = vmax.f32 %v338, 0.0
      %v386 = vmax.f32 %v340, 0.0
      %v387 = vmax.f32 %v379, 0.0
      %v388 = vmax.f32 %v381, 0.0
      %v389 = vlaneseq
      %v390 = vand.u32 %v389, 127
      %v391 = vadd.s32 %v390, 128
      %v392 = vadd.s32 %v390, 256
      %v393 = vadd.s32 %v390, 384
      %v394 = vand.u32 %v390, 15
      %v395 = vand.u32 %v391, 15
      %v396 = vand.u32 %v392, 15
      %v397 = vand.u32 %v393, 15
      %v398 = vshra.s32 %v390, 4
      %v399 = vshra.s32 %v391, 4
      %v400 = vshra.s32 %v392, 4
      %v401 = vshra.s32 %v393, 4
      %v402 = vand.u32 %v398, 15
      %v403 = vand.u32 %v399, 15
      %v404 = vand.u32 %v400, 15
      %v405 = vand.u32 %v401, 15
      %v406 = vadd.s32 %v394, 4294967295
      %v407 = vadd.s32 %v395, 4294967295
      %v408 = vadd.s32 %v396, 4294967295
      %v409 = vadd.s32 %v397, 4294967295
      %vm410 = vcmp.ge.s32.totalorder %v406, 0
      %vm411 = vcmp.ge.s32.totalorder %v407, 0
      %vm412 = vcmp.ge.s32.totalorder %v408, 0
      %vm413 = vcmp.ge.s32.totalorder %v409, 0
      %vm414 = vcmp.lt.s32.totalorder %v406, 16
      %vm415 = vcmp.lt.s32.totalorder %v407, 16
      %vm416 = vcmp.lt.s32.totalorder %v408, 16
      %vm417 = vcmp.lt.s32.totalorder %v409, 16
      %vm418 = vmand %vm410, %vm414
      %vm419 = vmand %vm411, %vm415
      %vm420 = vmand %vm412, %vm416
      %vm421 = vmand %vm413, %vm417
      %v422 = vadd.s32 %v394, 1
      %v423 = vadd.s32 %v395, 1
      %v424 = vadd.s32 %v396, 1
      %v425 = vadd.s32 %v397, 1
      %vm426 = vcmp.ge.s32.totalorder %v422, 0
      %vm427 = vcmp.ge.s32.totalorder %v423, 0
      %vm428 = vcmp.ge.s32.totalorder %v424, 0
      %vm429 = vcmp.ge.s32.totalorder %v425, 0
      %vm430 = vcmp.lt.s32.totalorder %v422, 16
      %vm431 = vcmp.lt.s32.totalorder %v423, 16
      %vm432 = vcmp.lt.s32.totalorder %v424, 16
      %vm433 = vcmp.lt.s32.totalorder %v425, 16
      %vm434 = vmand %vm426, %vm430
      %vm435 = vmand %vm427, %vm431
      %vm436 = vmand %vm428, %vm432
      %vm437 = vmand %vm429, %vm433
      %v438 = vadd.s32 %v402, 4294967295
      %v439 = vadd.s32 %v403, 4294967295
      %v440 = vadd.s32 %v404, 4294967295
      %v441 = vadd.s32 %v405, 4294967295
      %vm442 = vcmp.ge.s32.totalorder %v438, 0
      %vm443 = vcmp.ge.s32.totalorder %v439, 0
      %vm444 = vcmp.ge.s32.totalorder %v440, 0
      %vm445 = vcmp.ge.s32.totalorder %v441, 0
      %vm446 = vcmp.lt.s32.totalorder %v438, 16
      %vm447 = vcmp.lt.s32.totalorder %v439, 16
      %vm448 = vcmp.lt.s32.totalorder %v440, 16
      %vm449 = vcmp.lt.s32.totalorder %v441, 16
      %vm450 = vmand %vm442, %vm446
      %vm451 = vmand %vm443, %vm447
      %vm452 = vmand %vm444, %vm448
      %vm453 = vmand %vm445, %vm449
      %v454 = vadd.s32 %v402, 1
      %v455 = vadd.s32 %v403, 1
      %v456 = vadd.s32 %v404, 1
      %v457 = vadd.s32 %v405, 1
      %vm458 = vcmp.ge.s32.totalorder %v454, 0
      %vm459 = vcmp.ge.s32.totalorder %v455, 0
      %vm460 = vcmp.ge.s32.totalorder %v456, 0
      %vm461 = vcmp.ge.s32.totalorder %v457, 0
      %vm462 = vcmp.lt.s32.totalorder %v454, 16
      %vm463 = vcmp.lt.s32.totalorder %v455, 16
      %vm464 = vcmp.lt.s32.totalorder %v456, 16
      %vm465 = vcmp.lt.s32.totalorder %v457, 16
      %vm466 = vmand %vm458, %vm462
      %vm467 = vmand %vm459, %vm463
      %vm468 = vmand %vm460, %vm464
      %vm469 = vmand %vm461, %vm465
      %470 = vrot.lane.b32.xlu0 %v385, 17
      %v471 = vpop.permute.xlu0 %470
      %472 = vrot.lane.b32.xlu0 %v386, 17
      %v473 = vpop.permute.xlu0 %472
      %474 = vrot.lane.b32.xlu0 %v387, 17
      %v475 = vpop.permute.xlu0 %474
      %476 = vrot.lane.b32.xlu0 %v388, 17
      %v477 = vpop.permute.xlu0 %476
      %vm478 = vcmp.lt.s32.totalorder %v390, 17
      %v479 = vsel %vm478, %v475, %v477
      %v480 = vsel %vm478, %v473, %v475
      %v481 = vsel %vm478, %v471, %v473
      %v482 = vsel %vm478, %v477, %v471
      %vm483 = vmand %vm450, %vm418
      %vm484 = vmand %vm451, %vm419
      %vm485 = vmand %vm452, %vm420
      %vm486 = vmand %vm453, %vm421
      %v487 = vsel %vm483, 1, 0
      %v488 = vsel %vm484, 1, 0
      %v489 = vsel %vm485, 1, 0
      %v490 = vsel %vm486, 1, 0
      %vm491 = vcmp.eq.s32.totalorder %v487, 1
      %vm492 = vcmp.eq.s32.totalorder %v488, 1
      %vm493 = vcmp.eq.s32.totalorder %v489, 1
      %vm494 = vcmp.eq.s32.totalorder %v490, 1
      %v495 = vsel %vm491, %v482, 0.0
      %v496 = vsel %vm492, %v481, 0.0
      %v497 = vsel %vm493, %v480, 0.0
      %v498 = vsel %vm494, %v479, 0.0
      %499 = vrot.lane.b32.xlu0 %v385, 16
      %v500 = vpop.permute.xlu0 %499
      %501 = vrot.lane.b32.xlu0 %v386, 16
      %v502 = vpop.permute.xlu0 %501
      %503 = vrot.lane.b32.xlu0 %v387, 16
      %v504 = vpop.permute.xlu0 %503
      %505 = vrot.lane.b32.xlu0 %v388, 16
      %v506 = vpop.permute.xlu0 %505
      %vm507 = vcmp.lt.s32.totalorder %v390, 16
      %v508 = vsel %vm507, %v504, %v506
      %v509 = vsel %vm507, %v502, %v504
      %v510 = vsel %vm507, %v500, %v502
      %v511 = vsel %vm507, %v506, %v500
      %v512 = vsel %vm450, 1, 0
      %v513 = vsel %vm451, 1, 0
      %v514 = vsel %vm452, 1, 0
      %v515 = vsel %vm453, 1, 0
      %vm516 = vcmp.eq.s32.totalorder %v512, 1
      %vm517 = vcmp.eq.s32.totalorder %v513, 1
      %vm518 = vcmp.eq.s32.totalorder %v514, 1
      %vm519 = vcmp.eq.s32.totalorder %v515, 1
      %v520 = vsel %vm516, %v511, 0.0
      %v521 = vsel %vm517, %v510, 0.0
      %v522 = vsel %vm518, %v509, 0.0
      %v523 = vsel %vm519, %v508, 0.0
      %524 = vrot.lane.b32.xlu0 %v385, 15
      %v525 = vpop.permute.xlu0 %524
      %526 = vrot.lane.b32.xlu0 %v386, 15
      %v527 = vpop.permute.xlu0 %526
      %528 = vrot.lane.b32.xlu0 %v387, 15
      %v529 = vpop.permute.xlu0 %528
      %530 = vrot.lane.b32.xlu0 %v388, 15
      %v531 = vpop.permute.xlu0 %530
      %vm532 = vcmp.lt.s32.totalorder %v390, 15
      %v533 = vsel %vm532, %v529, %v531
      %v534 = vsel %vm532, %v527, %v529
      %v535 = vsel %vm532, %v525, %v527
      %v536 = vsel %vm532, %v531, %v525
      %vm537 = vmand %vm450, %vm434
      %vm538 = vmand %vm451, %vm435
      %vm539 = vmand %vm452, %vm436
      %vm540 = vmand %vm453, %vm437
      %v541 = vsel %vm537, 1, 0
      %v542 = vsel %vm538, 1, 0
      %v543 = vsel %vm539, 1, 0
      %v544 = vsel %vm540, 1, 0
      %vm545 = vcmp.eq.s32.totalorder %v541, 1
      %vm546 = vcmp.eq.s32.totalorder %v542, 1
      %vm547 = vcmp.eq.s32.totalorder %v543, 1
      %vm548 = vcmp.eq.s32.totalorder %v544, 1
      %v549 = vsel %vm545, %v536, 0.0
      %v550 = vsel %vm546, %v535, 0.0
      %v551 = vsel %vm547, %v534, 0.0
      %v552 = vsel %vm548, %v533, 0.0
      %553 = vrot.lane.b32.xlu0 %v385, 1
      %v554 = vpop.permute.xlu0 %553
      %555 = vrot.lane.b32.xlu0 %v386, 1
      %v556 = vpop.permute.xlu0 %555
      %557 = vrot.lane.b32.xlu0 %v387, 1
      %v558 = vpop.permute.xlu0 %557
      %559 = vrot.lane.b32.xlu0 %v388, 1
      %v560 = vpop.permute.xlu0 %559
      %vm561 = vcmp.lt.s32.totalorder %v390, 1
      %v562 = vsel %vm561, %v558, %v560
      %v563 = vsel %vm561, %v556, %v558
      %v564 = vsel %vm561, %v554, %v556
      %v565 = vsel %vm561, %v560, %v554
      %v566 = vsel %vm418, 1, 0
      %v567 = vsel %vm419, 1, 0
      %v568 = vsel %vm420, 1, 0
      %v569 = vsel %vm421, 1, 0
      %vm570 = vcmp.eq.s32.totalorder %v566, 1
      %vm571 = vcmp.eq.s32.totalorder %v567, 1
      %vm572 = vcmp.eq.s32.totalorder %v568, 1
      %vm573 = vcmp.eq.s32.totalorder %v569, 1
      %v574 = vsel %vm570, %v565, 0.0
      %v575 = vsel %vm571, %v564, 0.0
      %v576 = vsel %vm572, %v563, 0.0
      %v577 = vsel %vm573, %v562, 0.0
      %578 = vrot.lane.b32.xlu0 %v385, 127
      %v579 = vpop.permute.xlu0 %578
      %580 = vrot.lane.b32.xlu0 %v386, 127
      %v581 = vpop.permute.xlu0 %580
      %582 = vrot.lane.b32.xlu0 %v387, 127
      %v583 = vpop.permute.xlu0 %582
      %584 = vrot.lane.b32.xlu0 %v388, 127
      %v585 = vpop.permute.xlu0 %584
      %vm586 = vcmp.lt.s32.totalorder %v390, 127
      %v587 = vsel %vm586, %v583, %v585
      %v588 = vsel %vm586, %v581, %v583
      %v589 = vsel %vm586, %v579, %v581
      %v590 = vsel %vm586, %v585, %v579
      %v591 = vsel %vm434, 1, 0
      %v592 = vsel %vm435, 1, 0
      %v593 = vsel %vm436, 1, 0
      %v594 = vsel %vm437, 1, 0
      %vm595 = vcmp.eq.s32.totalorder %v591, 1
      %vm596 = vcmp.eq.s32.totalorder %v592, 1
      %vm597 = vcmp.eq.s32.totalorder %v593, 1
      %vm598 = vcmp.eq.s32.totalorder %v594, 1
      %v599 = vsel %vm595, %v589, 0.0
      %v600 = vsel %vm596, %v588, 0.0
      %v601 = vsel %vm597, %v587, 0.0
      %v602 = vsel %vm598, %v590, 0.0
      %603 = vrot.lane.b32.xlu0 %v385, 113
      %v604 = vpop.permute.xlu0 %603
      %605 = vrot.lane.b32.xlu0 %v386, 113
      %v606 = vpop.permute.xlu0 %605
      %607 = vrot.lane.b32.xlu0 %v387, 113
      %v608 = vpop.permute.xlu0 %607
      %609 = vrot.lane.b32.xlu0 %v388, 113
      %v610 = vpop.permute.xlu0 %609
      %vm611 = vcmp.lt.s32.totalorder %v390, 113
      %v612 = vsel %vm611, %v608, %v610
      %v613 = vsel %vm611, %v606, %v608
      %v614 = vsel %vm611, %v604, %v606
      %v615 = vsel %vm611, %v610, %v604
      %vm616 = vmand %vm466, %vm418
      %vm617 = vmand %vm467, %vm419
      %vm618 = vmand %vm468, %vm420
      %vm619 = vmand %vm469, %vm421
      %v620 = vsel %vm616, 1, 0
      %v621 = vsel %vm617, 1, 0
      %v622 = vsel %vm618, 1, 0
      %v623 = vsel %vm619, 1, 0
      %vm624 = vcmp.eq.s32.totalorder %v620, 1
      %vm625 = vcmp.eq.s32.totalorder %v621, 1
      %vm626 = vcmp.eq.s32.totalorder %v622, 1
      %vm627 = vcmp.eq.s32.totalorder %v623, 1
      %v628 = vsel %vm624, %v614, 0.0
      %v629 = vsel %vm625, %v613, 0.0
      %v630 = vsel %vm626, %v612, 0.0
      %v631 = vsel %vm627, %v615, 0.0
      %632 = vrot.lane.b32.xlu0 %v385, 112
      %v633 = vpop.permute.xlu0 %632
      %634 = vrot.lane.b32.xlu0 %v386, 112
      %v635 = vpop.permute.xlu0 %634
      %636 = vrot.lane.b32.xlu0 %v387, 112
      %v637 = vpop.permute.xlu0 %636
      %638 = vrot.lane.b32.xlu0 %v388, 112
      %v639 = vpop.permute.xlu0 %638
      %vm640 = vcmp.lt.s32.totalorder %v390, 112
      %v641 = vsel %vm640, %v637, %v639
      %v642 = vsel %vm640, %v635, %v637
      %v643 = vsel %vm640, %v633, %v635
      %v644 = vsel %vm640, %v639, %v633
      %v645 = vsel %vm466, 1, 0
      %v646 = vsel %vm467, 1, 0
      %v647 = vsel %vm468, 1, 0
      %v648 = vsel %vm469, 1, 0
      %vm649 = vcmp.eq.s32.totalorder %v645, 1
      %vm650 = vcmp.eq.s32.totalorder %v646, 1
      %vm651 = vcmp.eq.s32.totalorder %v647, 1
      %vm652 = vcmp.eq.s32.totalorder %v648, 1
      %v653 = vsel %vm649, %v643, 0.0
      %v654 = vsel %vm650, %v642, 0.0
      %v655 = vsel %vm651, %v641, 0.0
      %v656 = vsel %vm652, %v644, 0.0
      %657 = vrot.lane.b32.xlu0 %v385, 111
      %v658 = vpop.permute.xlu0 %657
      %659 = vrot.lane.b32.xlu0 %v386, 111
      %v660 = vpop.permute.xlu0 %659
      %661 = vrot.lane.b32.xlu0 %v387, 111
      %v662 = vpop.permute.xlu0 %661
      %663 = vrot.lane.b32.xlu0 %v388, 111
      %v664 = vpop.permute.xlu0 %663
      %vm665 = vcmp.lt.s32.totalorder %v390, 111
      %v666 = vsel %vm665, %v662, %v664
      %v667 = vsel %vm665, %v660, %v662
      %v668 = vsel %vm665, %v658, %v660
      %v669 = vsel %vm665, %v664, %v658
      %vm670 = vmand %vm466, %vm434
      %vm671 = vmand %vm467, %vm435
      %vm672 = vmand %vm468, %vm436
      %vm673 = vmand %vm469, %vm437
      %v674 = vsel %vm670, 1, 0
      %v675 = vsel %vm671, 1, 0
      %v676 = vsel %vm672, 1, 0
      %v677 = vsel %vm673, 1, 0
      %vm678 = vcmp.eq.s32.totalorder %v674, 1
      %vm679 = vcmp.eq.s32.totalorder %v675, 1
      %vm680 = vcmp.eq.s32.totalorder %v676, 1
      %vm681 = vcmp.eq.s32.totalorder %v677, 1
      %v682 = vsel %vm678, %v668, 0.0
      %v683 = vsel %vm679, %v667, 0.0
      %v684 = vsel %vm680, %v666, 0.0
      %v685 = vsel %vm681, %v669, 0.0
      %v690 = vrot.slane %v520, 4
      %v691 = vrot.slane %v521, 4
      %v692 = vrot.slane %v522, 4
      %v693 = vrot.slane %v523, 4
      %v702 = vrot.slane %v574, 4
      %v703 = vrot.slane %v575, 4
      %v704 = vrot.slane %v576, 4
      %v705 = vrot.slane %v577, 4
      %v714 = vrot.slane %v599, 4
      %v715 = vrot.slane %v600, 4
      %v716 = vrot.slane %v601, 4
      %v717 = vrot.slane %v602, 4
      %v726 = vrot.slane %v653, 4
      %v727 = vrot.slane %v654, 4
      %v728 = vrot.slane %v655, 4
      %v729 = vrot.slane %v656, 4
      %vm734 = vcmask 1043456
      %v735 = vsel %vm734, %v495, %v690
      %v736 = vsel %vm734, %v496, %v691
      %v737 = vsel %vm734, %v497, %v692
      %v738 = vsel %vm734, %v498, %v693
      %v739 = vsel %vm734, %v549, %v702
      %v740 = vsel %vm734, %v550, %v703
      %v741 = vsel %vm734, %v551, %v704
      %v742 = vsel %vm734, %v552, %v705
      %v743 = vsel %vm734, %v385, %v714
      %v744 = vsel %vm734, %v386, %v715
      %v745 = vsel %vm734, %v387, %v716
      %v746 = vsel %vm734, %v388, %v717
      %v747 = vsel %vm734, %v628, %v726
      %v748 = vsel %vm734, %v629, %v727
      %v749 = vsel %vm734, %v630, %v728
      %v750 = vsel %vm734, %v631, %v729
      %v751 = vpack.c.bf16 %v739, %v735
      %v752 = vpack.c.bf16 %v740, %v736
      %v753 = vpack.c.bf16 %v741, %v737
      %v754 = vpack.c.bf16 %v742, %v738
      %v755 = vpack.c.bf16 %v747, %v743
      %v756 = vpack.c.bf16 %v748, %v744
      %v757 = vpack.c.bf16 %v749, %v745
      %v758 = vpack.c.bf16 %v750, %v746
      %v759 = vpack.c.bf16 %v682, %v682
      %v760 = vpack.c.bf16 %v683, %v683
      %v761 = vpack.c.bf16 %v684, %v684
      %v762 = vpack.c.bf16 %v685, %v685
      %v763 = vld [vmem:[%s3] sm:$0x3]
      %v764 = vld [vmem:[%s4] sm:$0xf]
      %766 = vset.pattern.permute.xlu0 0
      %767 = vperm.xlu0 %766, %v764
      %v768 = vpop.permute.xlu0 %767
      %vm770 = vcmask 293888
      %v772 = vsel %vm770, %v763, 0
      %vm774 = vcmask 1041408
      %v776 = vsel %vm774, %v759, 0
      %v779 = vsel %vm774, %v760, 0
      %v782 = vsel %vm774, %v761, 0
      %v785 = vsel %vm774, %v762, 0
      %787 = vmatprep.subr.bf16.mxu0 0
      %788 = vmatpush1.bf16.msra.mxu0 0
      %789 = vmatprep.subr.bf16.mxu0 0
      %790 = vmatpush1.bf16.msra.mxu0 0
      %791 = vmatprep.subr.bf16.mxu0 0
      %792 = vmatpush1.bf16.msra.mxu0 0
      %793 = vmatprep.subr.bf16.mxu0 0
      %794 = vmatpush1.bf16.msra.mxu0 0
      %795 = vmatprep.subr.bf16.mxu0 0
      %796 = vmatpush1.bf16.msra.mxu0 0
      %797 = vmatprep.subr.bf16.mxu0 %v779
      %798 = vmatpush1.bf16.msra.mxu0 %v776
      %799 = vmatprep.subr.bf16.mxu0 %v756
      %800 = vmatpush1.bf16.msra.mxu0 %v755
      %801 = vmatprep.subr.bf16.mxu0 %v752
      %802 = vmatpush1.bf16.msra.mxu0 %v751
      %803 = vmatprep.subr.bf16.mxu0 0
      %804 = vmatpush2.bf16.msra.mxu0 0
      %805 = vmatprep.subr.bf16.mxu0 0
      %806 = vmatpush2.bf16.msra.mxu0 0
      %807 = vmatprep.subr.bf16.mxu0 0
      %808 = vmatpush2.bf16.msra.mxu0 0
      %809 = vmatprep.subr.bf16.mxu0 0
      %810 = vmatpush2.bf16.msra.mxu0 0
      %811 = vmatprep.subr.bf16.mxu0 0
      %812 = vmatpush2.bf16.msra.mxu0 0
      %813 = vmatprep.subr.bf16.mxu0 0
      %814 = vmatpush2.bf16.msra.mxu0 0
      %815 = vmatprep.subr.bf16.mxu0 0
      %816 = vmatpush2.bf16.msra.mxu0 0
      %817 = vmatprep.subr.bf16.mxu0 0
      %818 = vmatpush2.bf16.msra.mxu0 0
      %819 = vmatprep.mubr.bf16.mxu0 0
      %820 = vmatmul.mubr.bf16.gmra.mxu0 %v772
      %v821 = vpop.f32.mrf.mxu0
      %v822 = vadd.f32 %v768, %v821
      %v823 = vpop.f32.mrf.mxu0
      %v824 = vadd.f32 %v768, %v823
      %v825 = vpop.f32.mrf.mxu0
      %v826 = vpop.f32.mrf.mxu0
      %827 = vdwg.mxu0
      %828 = vmatprep.subr.bf16.mxu0 0
      %829 = vmatpush1.bf16.msra.mxu0 0
      %830 = vmatprep.subr.bf16.mxu0 0
      %831 = vmatpush1.bf16.msra.mxu0 0
      %832 = vmatprep.subr.bf16.mxu0 0
      %833 = vmatpush1.bf16.msra.mxu0 0
      %834 = vmatprep.subr.bf16.mxu0 0
      %835 = vmatpush1.bf16.msra.mxu0 0
      %836 = vmatprep.subr.bf16.mxu0 0
      %837 = vmatpush1.bf16.msra.mxu0 0
      %838 = vmatprep.subr.bf16.mxu0 %v785
      %839 = vmatpush1.bf16.msra.mxu0 %v782
      %840 = vmatprep.subr.bf16.mxu0 %v758
      %841 = vmatpush1.bf16.msra.mxu0 %v757
      %842 = vmatprep.subr.bf16.mxu0 %v754
      %843 = vmatpush1.bf16.msra.mxu0 %v753
      %844 = vmatprep.subr.bf16.mxu0 0
      %845 = vmatpush2.bf16.msra.mxu0 0
      %846 = vmatprep.subr.bf16.mxu0 0
      %847 = vmatpush2.bf16.msra.mxu0 0
      %848 = vmatprep.subr.bf16.mxu0 0
      %849 = vmatpush2.bf16.msra.mxu0 0
      %850 = vmatprep.subr.bf16.mxu0 0
      %851 = vmatpush2.bf16.msra.mxu0 0
      %852 = vmatprep.subr.bf16.mxu0 0
      %853 = vmatpush2.bf16.msra.mxu0 0
      %854 = vmatprep.subr.bf16.mxu0 0
      %855 = vmatpush2.bf16.msra.mxu0 0
      %856 = vmatprep.subr.bf16.mxu0 0
      %857 = vmatpush2.bf16.msra.mxu0 0
      %858 = vmatprep.subr.bf16.mxu0 0
      %859 = vmatpush2.bf16.msra.mxu0 0
      %860 = vmatprep.mubr.bf16.mxu0 0
      %861 = vmatmul.mubr.bf16.gmra.mxu0 %v772
      %v862 = vpop.f32.mrf.mxu0
      %v863 = vadd.f32 %v768, %v862
      %v864 = vpop.f32.mrf.mxu0
      %v865 = vadd.f32 %v768, %v864
      %v866 = vpop.f32.mrf.mxu0
      %v867 = vpop.f32.mrf.mxu0
      %868 = vdwg.mxu0
      %v869 = vmax.f32 %v822, 0.0
      %v870 = vmax.f32 %v824, 0.0
      %v871 = vmax.f32 %v863, 0.0
      %v872 = vmax.f32 %v865, 0.0
      %v873 = vld [vmem:[%s5] sm:$0xf]
      %v874 = vld [vmem:[%s5 + $0x4] sm:$0xf]
      %v875 = vpack.c.bf16 %v869, %v869
      %v876 = vpack.c.bf16 %v870, %v870
      %v877 = vpack.c.bf16 %v871, %v871
      %v878 = vpack.c.bf16 %v872, %v872
      %v879 = vld [vmem:[%s6] sm:$0xff]
      %v880 = vld [vmem:[%s6 + $0x8] sm:$0xff]
      %882 = vset.pattern.permute.xlu0 0
      %883 = vperm.xlu0 %882, %v879
      %v884 = vpop.permute.xlu0 %883
      %887 = vset.pattern.permute.xlu0 0
      %888 = vperm.xlu0 %887, %v880
      %v889 = vpop.permute.xlu0 %888
      %v893 = vunpack.c.l.b16 %v873
      %v894 = vunpack.c.l.b16 %v874
      %v895 = vpack.c.b16 %v894, %v893
      %vm896 = vcmask 31744
      %v898 = vsel %vm896, %v895, 0
      %v901 = vsel %vm774, %v875, 0
      %v904 = vsel %vm774, %v876, 0
      %v907 = vsel %vm774, %v877, 0
      %v910 = vsel %vm774, %v878, 0
      %912 = vmatprep.subr.bf16.mxu0 0
      %913 = vmatpush1.bf16.msra.mxu0 0
      %914 = vmatprep.subr.bf16.mxu0 0
      %915 = vmatpush1.bf16.msra.mxu0 0
      %916 = vmatprep.subr.bf16.mxu0 0
      %917 = vmatpush1.bf16.msra.mxu0 0
      %918 = vmatprep.subr.bf16.mxu0 0
      %919 = vmatpush1.bf16.msra.mxu0 0
      %920 = vmatprep.subr.bf16.mxu0 0
      %921 = vmatpush1.bf16.msra.mxu0 0
      %922 = vmatprep.subr.bf16.mxu0 0
      %923 = vmatpush1.bf16.msra.mxu0 0
      %924 = vmatprep.subr.bf16.mxu0 0
      %925 = vmatpush1.bf16.msra.mxu0 0
      %926 = vmatprep.subr.bf16.mxu0 %v904
      %927 = vmatpush1.bf16.msra.mxu0 %v901
      %928 = vmatprep.subr.bf16.mxu0 0
      %929 = vmatpush2.bf16.msra.mxu0 0
      %930 = vmatprep.subr.bf16.mxu0 0
      %931 = vmatpush2.bf16.msra.mxu0 0
      %932 = vmatprep.subr.bf16.mxu0 0
      %933 = vmatpush2.bf16.msra.mxu0 0
      %934 = vmatprep.subr.bf16.mxu0 0
      %935 = vmatpush2.bf16.msra.mxu0 0
      %936 = vmatprep.subr.bf16.mxu0 0
      %937 = vmatpush2.bf16.msra.mxu0 0
      %938 = vmatprep.subr.bf16.mxu0 0
      %939 = vmatpush2.bf16.msra.mxu0 0
      %940 = vmatprep.subr.bf16.mxu0 0
      %941 = vmatpush2.bf16.msra.mxu0 0
      %942 = vmatprep.subr.bf16.mxu0 0
      %943 = vmatpush2.bf16.msra.mxu0 0
      %944 = vmatprep.mubr.bf16.mxu0 0
      %945 = vmatmul.mubr.bf16.gmra.mxu0 %v898
      %v946 = vpop.f32.mrf.mxu0
      %v947 = vadd.f32 %v884, %v946
      %v948 = vpop.f32.mrf.mxu0
      %v949 = vadd.f32 %v884, %v948
      %v950 = vpop.f32.mrf.mxu0
      %v951 = vadd.f32 %v889, %v950
      %v952 = vpop.f32.mrf.mxu0
      %v953 = vadd.f32 %v889, %v952
      %954 = vdwg.mxu0
      %955 = vmatprep.subr.bf16.mxu0 0
      %956 = vmatpush1.bf16.msra.mxu0 0
      %957 = vmatprep.subr.bf16.mxu0 0
      %958 = vmatpush1.bf16.msra.mxu0 0
      %959 = vmatprep.subr.bf16.mxu0 0
      %960 = vmatpush1.bf16.msra.mxu0 0
      %961 = vmatprep.subr.bf16.mxu0 0
      %962 = vmatpush1.bf16.msra.mxu0 0
      %963 = vmatprep.subr.bf16.mxu0 0
      %964 = vmatpush1.bf16.msra.mxu0 0
      %965 = vmatprep.subr.bf16.mxu0 0
      %966 = vmatpush1.bf16.msra.mxu0 0
      %967 = vmatprep.subr.bf16.mxu0 0
      %968 = vmatpush1.bf16.msra.mxu0 0
      %969 = vmatprep.subr.bf16.mxu0 %v910
      %970 = vmatpush1.bf16.msra.mxu0 %v907
      %971 = vmatprep.subr.bf16.mxu0 0
      %972 = vmatpush2.bf16.msra.mxu0 0
      %973 = vmatprep.subr.bf16.mxu0 0
      %974 = vmatpush2.bf16.msra.mxu0 0
      %975 = vmatprep.subr.bf16.mxu0 0
      %976 = vmatpush2.bf16.msra.mxu0 0
      %977 = vmatprep.subr.bf16.mxu0 0
      %978 = vmatpush2.bf16.msra.mxu0 0
      %979 = vmatprep.subr.bf16.mxu0 0
      %980 = vmatpush2.bf16.msra.mxu0 0
      %981 = vmatprep.subr.bf16.mxu0 0
      %982 = vmatpush2.bf16.msra.mxu0 0
      %983 = vmatprep.subr.bf16.mxu0 0
      %984 = vmatpush2.bf16.msra.mxu0 0
      %985 = vmatprep.subr.bf16.mxu0 0
      %986 = vmatpush2.bf16.msra.mxu0 0
      %987 = vmatprep.mubr.bf16.mxu0 0
      %988 = vmatmul.mubr.bf16.gmra.mxu0 %v898
      %v989 = vpop.f32.mrf.mxu0
      %v990 = vadd.f32 %v884, %v989
      %v991 = vpop.f32.mrf.mxu0
      %v992 = vadd.f32 %v884, %v991
      %v993 = vpop.f32.mrf.mxu0
      %v994 = vadd.f32 %v889, %v993
      %v995 = vpop.f32.mrf.mxu0
      %v996 = vadd.f32 %v889, %v995
      %997 = vdwg.mxu0
      %v998 = vadd.f32 %v947, %v280
      %v999 = vadd.f32 %v949, %v281
      %v1000 = vadd.f32 %v990, %v282
      %v1001 = vadd.f32 %v992, %v283
      %v1002 = vadd.f32 %v951, %v284
      %v1003 = vadd.f32 %v953, %v285
      %v1004 = vadd.f32 %v994, %v286
      %v1005 = vadd.f32 %v996, %v287
      %v1006 = vmax.f32 %v998, 0.0
      %v1007 = vmax.f32 %v999, 0.0
      %v1008 = vmax.f32 %v1000, 0.0
      %v1009 = vmax.f32 %v1001, 0.0
      %v1010 = vmax.f32 %v1002, 0.0
      %v1011 = vmax.f32 %v1003, 0.0
      %v1012 = vmax.f32 %v1004, 0.0
      %v1013 = vmax.f32 %v1005, 0.0
      %1014 = vst [vmem:[%s278] sm:$0xff] %v1006
      %1015 = vst [vmem:[%s278 + $0x8] sm:$0xff] %v1007
      %1016 = vst [vmem:[%s278 + $0x10] sm:$0xff] %v1008
      %1017 = vst [vmem:[%s278 + $0x18] sm:$0xff] %v1009
      %1018 = vst [vmem:[%s278 + $0x20] sm:$0xff] %v1010
      %1019 = vst [vmem:[%s278 + $0x28] sm:$0xff] %v1011
      %1020 = vst [vmem:[%s278 + $0x30] sm:$0xff] %v1012
      %1021 = vst [vmem:[%s278 + $0x38] sm:$0xff] %v1013
      %p1022 = scmp.lt.s32.totalorder %s18, 1
      %s1023 = scalar_select %p1022, %s18, 1
      %s1024 = smul.addr %s1023, 8
      %s1025 = smul.addr %s1024, 8
      %s1026 = scalar_lea.vmem %s7, %s1025
      // Predicated region
      $region49: #{bottleneck_forward.1} parent=47 // pred_check
        %p1027 = pneg %p188
      $region50: #{bottleneck_forward.1} parent=47 // pred_check_branch
        %1029 = sbr.rel (%p1027) target = $region52
      $region51: #{bottleneck_forward.1} parent=47 // pred_region
        _
      $region52: #{bottleneck_forward.1} parent=47 // pred_fallthru
        _
    $region48: #{bottleneck_forward.1} parent=5 // pred_fallthru
      _
    %p1030 = scmp.le.s32.totalorder 2, %s13
    // Predicated region
    $region53: #{bottleneck_forward.1} parent=5 // pred_check
      %p1031 = pneg %p1030
    $region54: #{bottleneck_forward.1} parent=5 // pred_check_branch
      %1033 = sbr.rel (%p1031) target = $region56
    $region55: #{bottleneck_forward.1} parent=5 // pred_region
      %s1034 = ssub.s32 %s13, 2
      // Predicated region
      $region57: #{bottleneck_forward.1} parent=55 // pred_check
        %p1035 = pneg %p194
      $region58: #{bottleneck_forward.1} parent=55 // pred_check_branch
        %1037 = sbr.rel (%p1035) target = $region60
      $region59: #{bottleneck_forward.1} parent=55 // pred_region
        %p1038 = scmp.lt.s32.totalorder %s19, 1
        %s1039 = scalar_select %p1038, %s19, 1
        %s1040 = smul.addr %s1039, 8
        %s1041 = smul.addr %s1040, 8
        %s1042 = scalar_lea.vmem %s7, %s1041
      $region60: #{bottleneck_forward.1} parent=55 // pred_fallthru
        _
    $region56: #{bottleneck_forward.1} parent=5 // pred_fallthru
      _
  $region6: #{bottleneck_forward.1} parent=0 // loop_footer
    %s17 = sadd.s32 1, %s13
  $region7: #{bottleneck_forward.1} parent=0 // loop_footer_branch
    %12 = sbr.rel target = $region3
  $region8: #{bottleneck_forward.1} parent=0 // loop_exit
    _

</llo_original>
